<compile_context>
chip_gen: v5e
topology: v5e:2x2
jax: 0.10.0
libtpu: 0.0.40
codegen_flags: <defaults>
</compile_context>

<pallas_src>
import functools

import jax
import jax.numpy as jnp
import numpy as np
from jax.experimental import pallas as pl
from jax.experimental.pallas import tpu as pltpu


# ------------------------------- kernels -----------------------------------

def _chunk_repr_split_kernel(cand_ref, gfwd_ref, gbwd_ref, o_ref, *, d):
    """Half-width path (d % 128 == 0): two lane-dense half matmuls, two stores."""
    g_fwd = gfwd_ref[0]            # (p_len, d)  forward-gammas half
    g_bwd = gbwd_ref[0]            # (p_len, d)  backward-gammas half
    cand = cand_ref[0]             # (TC, 2)     int32
    tc = cand.shape[0]
    p_len = g_fwd.shape[0]

    first = cand[:, 0:1]           # (TC, 1) first-word index per candidate
    last = cand[:, 1:2]            # (TC, 1) last-word index per candidate

    rows = jax.lax.broadcasted_iota(jnp.int32, (tc, p_len), 1)
    oh_first = (rows == first).astype(g_fwd.dtype)   # (TC, p_len) one-hot
    oh_last = (rows == last).astype(g_bwd.dtype)     # (TC, p_len) one-hot

    # Gather-as-matmul on the MXU (exact: one 1.0 per row, f32 accumulation).
    gf = jnp.dot(oh_first, g_fwd, preferred_element_type=jnp.float32)  # (TC, d)
    gb = jnp.dot(oh_last, g_bwd, preferred_element_type=jnp.float32)   # (TC, d)

    # d is a multiple of 128 -> both stores are lane-aligned and unmasked.
    o_ref[0, :, :d] = gf.astype(o_ref.dtype)
    o_ref[0, :, d:] = gb.astype(o_ref.dtype)


def _chunk_repr_select_kernel(cand_ref, g_ref, o_ref, *, d):
    """Fallback path (d % 128 != 0): full-width matmuls + single lane-select."""
    g = g_ref[0]                   # (p_len, t)
    cand = cand_ref[0]             # (TC, 2) int32
    tc = cand.shape[0]
    p_len, t = g.shape

    first = cand[:, 0:1]
    last = cand[:, 1:2]

    rows = jax.lax.broadcasted_iota(jnp.int32, (tc, p_len), 1)
    oh_first = (rows == first).astype(g.dtype)
    oh_last = (rows == last).astype(g.dtype)

    gf = jnp.dot(oh_first, g, preferred_element_type=jnp.float32)   # (TC, t)
    gb = jnp.dot(oh_last, g, preferred_element_type=jnp.float32)    # (TC, t)

    # (1, t) column mask broadcast over TC rows (cheaper than a (TC, t) iota).
    col = jax.lax.broadcasted_iota(jnp.int32, (1, t), 1)
    o_ref[0] = jnp.where(col < d, gf, gb).astype(o_ref.dtype)


# ------------------------------- wrapper ------------------------------------

def _pick_candidate_tile(C, p_len, itemsize):
    """TC: bound the (TC, p_len) one-hot temps to ~2 MiB; multiple of 8 that divides C."""
    budget = max(128, (2 << 20) // max(1, p_len * itemsize))
    if C <= 8 or C <= budget:
        return C
    tc = (budget // 8) * 8
    while tc >= 8:
        if C % tc == 0:
            return tc
        tc -= 8
    return C


def chunk_representation_layer(gammas, candidates,
                               p_enc=None, q_enc=None, p_mask=None, q_mask=None,
                               *, candidate_tile=None):
    """Pallas equivalent of ChunkRepresentationLayer.forward.

    gammas:     (B, p_len, 2d) float
    candidates: (B, C, 2)      integer indices into the p_len axis
    returns:    (B, C, 2d)     same dtype as gammas
    """
    B, p_len, t = gammas.shape
    _, C, _ = candidates.shape
    d = t // 2
    assert t == 2 * d, "gammas last dim must be even (= 2*d)"
    candidates = candidates.astype(jnp.int32)

    itemsize = jnp.dtype(gammas.dtype).itemsize
    tc = candidate_tile if candidate_tile is not None else _pick_candidate_tile(
        C, p_len, itemsize)
    if tc <= 0 or C % tc != 0 or (tc != C and tc % 8 != 0):
        tc = C                      # fall back to a single candidate tile
    num_ct = C // tc

    # Per-step VMEM footprint estimate (double-buffered blocks + temporaries).
    est = (2 * p_len * t * itemsize            # gammas block(s): fwd + bwd halves
           + 2 * tc * t * itemsize             # output block
           + 4 * tc * p_len * itemsize         # one-hot / gather temporaries
           + 4 * tc * 2 * 4                    # candidate indices
           + (1 << 20))                        # headroom
    vmem_limit = int(min(100 << 20, max(32 << 20, 2 * est)))

    cparams = pltpu.CompilerParams(
        dimension_semantics=("parallel", "parallel"),
        vmem_limit_bytes=vmem_limit,
    )

    out_shape = jax.ShapeDtypeStruct((B, C, t), gammas.dtype)
    cand_spec = pl.BlockSpec((1, tc, 2), lambda b, c: (b, c, 0))
    out_spec = pl.BlockSpec((1, tc, t), lambda b, c: (b, c, 0))
    grid = (B, num_ct)

    if d % 128 == 0:
        # Half-width matmul path: DMA forward / backward gamma halves as two
        # separate lane-dense blocks of the same HBM array.
        kern = functools.partial(_chunk_repr_split_kernel, d=d)
        return pl.pallas_call(
            kern,
            out_shape=out_shape,
            grid=grid,
            in_specs=[
                cand_spec,
                pl.BlockSpec((1, p_len, d), lambda b, c: (b, 0, 0)),  # gammas[:, :, :d]
                pl.BlockSpec((1, p_len, d), lambda b, c: (b, 0, 1)),  # gammas[:, :, d:]
            ],
            out_specs=out_spec,
            compiler_params=cparams,
        )(candidates, gammas, gammas)

    # Fallback: full-width matmuls + lane select (d not 128-aligned).
    kern = functools.partial(_chunk_repr_select_kernel, d=d)
    return pl.pallas_call(
        kern,
        out_shape=out_shape,
        grid=grid,
        in_specs=[
            cand_spec,
            pl.BlockSpec((1, p_len, t), lambda b, c: (b, 0, 0)),
        ],
        out_specs=out_spec,
        compiler_params=cparams,
    )(candidates, gammas)


# ---------------------- Pure-JAX reference (sanity) -------------------------

def reference(gammas, candidates):
    B, p_len, t = gammas.shape
    _, C, _ = candidates.shape
    d = t // 2
    fwd, bwd = gammas[..., :d], gammas[..., d:]
    fi = jnp.broadcast_to(candidates[:, :, 0:1], (B, C, d))
    li = jnp.broadcast_to(candidates[:, :, 1:2], (B, C, d))
    first_forward = jnp.take_along_axis(fwd, fi, axis=1)
    last_backward = jnp.take_along_axis(bwd, li, axis=1)
    return jnp.concatenate([first_forward, last_backward], axis=-1)


def _make_inputs(key, B, p_len, d, C, dtype=jnp.float32):
    t = 2 * d
    kg, k1, k2 = jax.random.split(key, 3)
    gammas = jax.random.normal(kg, (B, p_len, t), dtype)
    first = jax.random.randint(k1, (B, C), 0, p_len, jnp.int32)
    span = jax.random.randint(k2, (B, C), 0, 4, jnp.int32)
    last = jnp.clip(first + span, 0, p_len - 1).astype(jnp.int32)
    candidates = jnp.stack([first, last], axis=-1)   # (B, C, 2) int32
    return gammas, candidates


# --------------------------------- main --------------------------------------

if __name__ == "__main__":
    root = jax.random.PRNGKey(0)
    k1, k2, k3 = jax.random.split(root, 3)

    # 1) Fallback lane-select path (d not a multiple of 128).
    gammas, candidates = _make_inputs(k1, B=2, p_len=16, d=16, C=8)
    out = jax.block_until_ready(chunk_representation_layer(gammas, candidates))
    np.testing.assert_allclose(np.asarray(out),
                               np.asarray(reference(gammas, candidates)),
                               rtol=1e-5, atol=1e-5)

    # 2) Half-width matmul path (d % 128 == 0), lane-aligned split stores.
    gammas, candidates = _make_inputs(k2, B=2, p_len=16, d=128, C=8)
    out = jax.block_until_ready(chunk_representation_layer(gammas, candidates))
    np.testing.assert_allclose(np.asarray(out),
                               np.asarray(reference(gammas, candidates)),
                               rtol=1e-5, atol=1e-5)

    # 3) Half-width path with a candidate-tiled grid (grid=(B, C//TC)).
    gammas, candidates = _make_inputs(k3, B=2, p_len=16, d=128, C=16)
    out = jax.block_until_ready(
        chunk_representation_layer(gammas, candidates, candidate_tile=8))
    np.testing.assert_allclose(np.asarray(out),
                               np.asarray(reference(gammas, candidates)),
                               rtol=1e-5, atol=1e-5)

    print("KERNEL_OK")
</pallas_src>

<mosaic_0001>
module attributes {stable_mosaic.version = 11 : i64} {
  func.func @_chunk_repr_select_kernel(%arg0: i32, %arg1: i32, %arg2: memref<1x8x2xi32, #tpu.memory_space<vmem>>, %arg3: memref<1x16x32xf32, #tpu.memory_space<vmem>>, %arg4: memref<1x8x32xf32, #tpu.memory_space<vmem>>) attributes {dimension_semantics = [#tpu.dimension_semantics<parallel>, #tpu.dimension_semantics<parallel>], iteration_bounds = array<i64: 2, 1>, scalar_prefetch = 0 : i64, scratch_operands = 0 : i64, tpu.core_type = #tpu.core_type<tc>, window_params = [{transform_indices = @transform_0, window_bounds = array<i64: 1, 8, 2>}, {transform_indices = @transform_1, window_bounds = array<i64: 1, 16, 32>}, {transform_indices = @transform_2, window_bounds = array<i64: 1, 8, 32>}]} {
    %c0 = arith.constant 0 : index
    %c0_0 = arith.constant 0 : index
    %c0_1 = arith.constant 0 : index
    %0 = vector.load %arg3[%c0, %c0_0, %c0_1] : memref<1x16x32xf32, #tpu.memory_space<vmem>>, vector<1x16x32xf32>
    %1 = vector.shape_cast %0 : vector<1x16x32xf32> to vector<16x32xf32>
    %c0_2 = arith.constant 0 : index
    %c0_3 = arith.constant 0 : index
    %c0_4 = arith.constant 0 : index
    %2 = vector.load %arg2[%c0_2, %c0_3, %c0_4] : memref<1x8x2xi32, #tpu.memory_space<vmem>>, vector<1x8x2xi32>
    %3 = vector.shape_cast %2 : vector<1x8x2xi32> to vector<8x2xi32>
    %4 = vector.extract_strided_slice %3 {offsets = [0, 0], sizes = [8, 1], strides = [1, 1]} : vector<8x2xi32> to vector<8x1xi32>
    %5 = vector.extract_strided_slice %3 {offsets = [0, 1], sizes = [8, 1], strides = [1, 1]} : vector<8x2xi32> to vector<8x1xi32>
    %6 = tpu.iota {dimensions = array<i32: 1>} : vector<8x16xi32>
    %7 = vector.broadcast %4 : vector<8x1xi32> to vector<8x16xi32>
    %8 = arith.cmpi eq, %6, %7 : vector<8x16xi32>
    %9 = arith.extui %8 : vector<8x16xi1> to vector<8x16xi32>
    %10 = arith.sitofp %9 : vector<8x16xi32> to vector<8x16xf32>
    %11 = vector.broadcast %5 : vector<8x1xi32> to vector<8x16xi32>
    %12 = arith.cmpi eq, %6, %11 : vector<8x16xi32>
    %13 = arith.extui %12 : vector<8x16xi1> to vector<8x16xi32>
    %14 = arith.sitofp %13 : vector<8x16xi32> to vector<8x16xf32>
    %cst = arith.constant dense<0.000000e+00> : vector<8x32xf32>
    %15 = tpu.matmul %10, %1, %cst {dimension_numbers = #tpu.dot_dimension_numbers<[1], [0], [0], [1], [0, 0, 1, 1], [], []>} : vector<8x16xf32>, vector<16x32xf32>, vector<8x32xf32> -> vector<8x32xf32>
    %cst_5 = arith.constant dense<0.000000e+00> : vector<8x32xf32>
    %16 = tpu.matmul %14, %1, %cst_5 {dimension_numbers = #tpu.dot_dimension_numbers<[1], [0], [0], [1], [0, 0, 1, 1], [], []>} : vector<8x16xf32>, vector<16x32xf32>, vector<8x32xf32> -> vector<8x32xf32>
    %17 = tpu.iota {dimensions = array<i32: 1>} : vector<1x32xi32>
    %c16_i32 = arith.constant 16 : i32
    %18 = vector.broadcast %c16_i32 : i32 to vector<1x32xi32>
    %19 = arith.cmpi slt, %17, %18 : vector<1x32xi32>
    %20 = vector.shape_cast %19 : vector<1x32xi1> to vector<1x32xi1>
    %21 = vector.broadcast %20 : vector<1x32xi1> to vector<8x32xi1>
    %22 = arith.select %21, %15, %16 : vector<8x32xi1>, vector<8x32xf32>
    %c0_6 = arith.constant 0 : index
    %c0_7 = arith.constant 0 : index
    %c0_8 = arith.constant 0 : index
    %23 = vector.load %arg4[%c0_6, %c0_7, %c0_8] : memref<1x8x32xf32, #tpu.memory_space<vmem>>, vector<1x8x32xf32>
    %24 = vector.shape_cast %23 : vector<1x8x32xf32> to vector<8x32xf32>
    %25 = vector.shape_cast %22 : vector<8x32xf32> to vector<1x8x32xf32>
    tpu.vector_store %arg4[%c0_6, %c0_7, %c0_8], %25 {strides = array<i32>} : memref<1x8x32xf32, #tpu.memory_space<vmem>>, vector<1x8x32xf32>,
    return
  }
  func.func @transform_0(%arg0: i32, %arg1: i32) -> (i32, i32, i32) {
    %c0_i32 = arith.constant 0 : i32
    %c0_i32_0 = arith.constant 0 : i32
    return %arg0, %arg1, %c0_i32 : i32, i32, i32
  }
  func.func @transform_1(%arg0: i32, %arg1: i32) -> (i32, i32, i32) {
    %c0_i32 = arith.constant 0 : i32
    %c0_i32_0 = arith.constant 0 : i32
    %c0_i32_1 = arith.constant 0 : i32
    return %arg0, %c0_i32, %c0_i32_0 : i32, i32, i32
  }
  func.func @transform_2(%arg0: i32, %arg1: i32) -> (i32, i32, i32) {
    %c0_i32 = arith.constant 0 : i32
    %c0_i32_0 = arith.constant 0 : i32
    return %arg0, %arg1, %c0_i32 : i32, i32, i32
  }
}

</mosaic_0001>

<llo_original>
// kernel: tpu_custom_call.1
$region0: #{tpu_custom_call.1}
  #allocation0 [shape = 'u32[]', space=smem, size = 0x4, offset = 0x4, fixed_abs, tag = 'smem constant byte address 0x4 - core index']
  #allocation1 [shape = 'u32[72,128]{1,0:T(1,128)}', space=vmem, size = 0x9000, scoped, tag = 'internal scratch']
  %s0 = inlined_call_operand.vmem [shape: s32[2,8,2], index: 0, kind: input, shape index: {}]
  %s1 = inlined_call_operand.hbm [shape: f32[2,16,32], index: 1, kind: input, shape index: {}]
  %s2 = inlined_call_operand.hbm [shape: f32[2,8,32], index: 2, kind: output, shape index: {}]
  %s3 = sld [smem:[#allocation0]]
  $region45: #{tpu_custom_call.1} parent=0
    _
  %s5 = ssub.s32 1, %s3
  %s6 = scalar_select 0, %s5, %s3
  $region1: #{tpu_custom_call.1} parent=0
    #allocation2 [shape = 'u8[16384]{0}', space=vmem, size = 0x4000, scoped, tag = 'input window, operand 1']
    #allocation3 [shape = 's32[2]{0}', space=sflag, size = 0x8, scoped, tag = 'scoped memory for tpu_custom_call.1']
    #allocation4 [shape = 's32[2]{0}', space=sflag, size = 0x8, scoped, tag = 'scoped memory for tpu_custom_call.1']
    #allocation5 [shape = 'u8[8192]{0}', space=vmem, size = 0x2000, scoped, tag = 'output window, operand 0']
    %7 = vsyncpa [#allocation3], 0
    %s8 = scalar_lea.sflag [#allocation3], 1
    %9 = vsyncpa %s8, 0
    %10 = vsyncpa [#allocation4], 0
    %s11 = scalar_lea.sflag [#allocation4], 1
    %12 = vsyncpa %s11, 0
    loop: start=0, step=1, limit=4
    $region2: #{tpu_custom_call.1} parent=1 // loop_pre_header
      _
    $region3: #{tpu_custom_call.1} parent=1 // loop_header
      %s14 = sphi 0, %s18
      %p15 = scmp.ge.s32.totalorder %s14, 4
      %s21 = sphi 0, %s33
      %s22 = sphi 0, %s29
      %s23 = sphi 0, %s21
      %s24 = sphi 0, %s22
      %s25 = sphi 0, %s23
      %s26 = sphi 0, %s24
      %s38 = sphi 0, %s40
      %s41 = sphi 0, %s38
      %s42 = sphi 0, %s41
      %s58 = sphi 0, %s42
      %s64 = sphi 0, %s66
      %s67 = sphi 0, %s64
      %s68 = sphi 0, %s67
      %s84 = sphi 0, %s68
      %s92 = sphi 0, %s94
      %s95 = sphi 0, %s92
      %s96 = sphi 0, %s95
      %s112 = sphi 0, %s96
    $region4: #{tpu_custom_call.1} parent=1 // loop_header_branch
      %17 = sbr.rel (%p15) target = $region8
    $region5: #{tpu_custom_call.1} parent=1 // loop_body
      %s19 = ssub.s32 %s14, 1
      %s20 = ssub.s32 %s14, 2
      %s27 = sadd.s32 1, %s22
      %p28 = scmp.ge.s32.totalorder %s27, 1
      %s29 = scalar_select %p28, 0, %s27
      %s30 = sadd.s32 1, %s21
      %s31 = scalar_select %p28, %s30, %s21
      %p32 = scmp.ge.s32.totalorder %s31, 2
      %s33 = scalar_select %p32, 0, %s31
      %s34 = ssub.s32 %s21, %s33
      %s35 = ssub.s32 %s22, %s29
      %s36 = sor.u32 %s34, %s35
      %p37 = scmp.eq.s32.totalorder %s36, 0
      %s39 = sadd.s32 %s38, 1
      %s40 = scalar_select %p37, %s38, %s39
      %p43 = pneg %p37
      %p44 = scmp.eq.s32.totalorder %s14, 1
      %p45 = por %p43, %p44
      %p46 = scmp.ne.s32.totalorder %s38, %s41
      %p47 = scmp.eq.s32.totalorder %s14, 0
      %p48 = por %p46, %p47
      %p49 = scmp.ne.s32.totalorder %s38, %s41
      %p50 = scmp.eq.s32.totalorder %s19, 1
      %p51 = por %p49, %p50
      %p52 = scmp.ne.s32.totalorder %s41, %s42
      %p53 = scmp.eq.s32.totalorder %s19, 0
      %p54 = por %p52, %p53
      %p55 = scmp.ne.s32.totalorder %s41, %s42
      %p56 = scmp.eq.s32.totalorder %s20, 1
      %p57 = por %p55, %p56
      %p59 = scmp.ne.s32.totalorder %s42, %s58
      %p60 = scmp.eq.s32.totalorder %s20, 0
      %p61 = por %p59, %p60
      %s62 = ssub.s32 %s21, %s33
      %p63 = scmp.eq.s32.totalorder %s62, 0
      %s65 = sadd.s32 %s64, 1
      %s66 = scalar_select %p63, %s64, %s65
      %p69 = pneg %p63
      %p70 = scmp.eq.s32.totalorder %s14, 1
      %p71 = por %p69, %p70
      %p72 = scmp.ne.s32.totalorder %s64, %s67
      %p73 = scmp.eq.s32.totalorder %s14, 0
      %p74 = por %p72, %p73
      %p75 = scmp.ne.s32.totalorder %s64, %s67
      %p76 = scmp.eq.s32.totalorder %s19, 1
      %p77 = por %p75, %p76
      %p78 = scmp.ne.s32.totalorder %s67, %s68
      %p79 = scmp.eq.s32.totalorder %s19, 0
      %p80 = por %p78, %p79
      %p81 = scmp.ne.s32.totalorder %s67, %s68
      %p82 = scmp.eq.s32.totalorder %s20, 1
      %p83 = por %p81, %p82
      %p85 = scmp.ne.s32.totalorder %s68, %s84
      %p86 = scmp.eq.s32.totalorder %s20, 0
      %p87 = por %p85, %p86
      %s88 = ssub.s32 %s21, %s33
      %s89 = ssub.s32 %s22, %s29
      %s90 = sor.u32 %s88, %s89
      %p91 = scmp.eq.s32.totalorder %s90, 0
      %s93 = sadd.s32 %s92, 1
      %s94 = scalar_select %p91, %s92, %s93
      %p97 = pneg %p91
      %p98 = scmp.eq.s32.totalorder %s14, 1
      %p99 = por %p97, %p98
      %p100 = scmp.ne.s32.totalorder %s92, %s95
      %p101 = scmp.eq.s32.totalorder %s14, 0
      %p102 = por %p100, %p101
      %p103 = scmp.ne.s32.totalorder %s92, %s95
      %p104 = scmp.eq.s32.totalorder %s19, 1
      %p105 = por %p103, %p104
      %p106 = scmp.ne.s32.totalorder %s95, %s96
      %p107 = scmp.eq.s32.totalorder %s19, 0
      %p108 = por %p106, %p107
      %p109 = scmp.ne.s32.totalorder %s95, %s96
      %p110 = scmp.eq.s32.totalorder %s20, 1
      %p111 = por %p109, %p110
      %p113 = scmp.ne.s32.totalorder %s96, %s112
      %p114 = scmp.eq.s32.totalorder %s20, 0
      %p115 = por %p113, %p114
      %p116 = scmp.le.s32.totalorder 1, %s14
      %p117 = scmp.lt.s32.totalorder %s14, 3
      %p118 = pnand %p116, %p117
      %p119 = pneg %p118
      // Predicated region
      $region9: #{tpu_custom_call.1} parent=5 // pred_check
        _
      $region10: #{tpu_custom_call.1} parent=5 // pred_check_branch
        %121 = sbr.rel (%p118) target = $region12
      $region11: #{tpu_custom_call.1} parent=5 // pred_region
        %s122 = ssub.s32 %s14, 1
      $region12: #{tpu_custom_call.1} parent=5 // pred_fallthru
        _
      %p123 = scmp.lt.s32.totalorder %s14, 2
      // Predicated region
      $region13: #{tpu_custom_call.1} parent=5 // pred_check
        %p124 = pneg %p123
      $region14: #{tpu_custom_call.1} parent=5 // pred_check_branch
        %126 = sbr.rel (%p124) target = $region16
      $region15: #{tpu_custom_call.1} parent=5 // pred_region
        // Predicated region
        $region17: #{tpu_custom_call.1} parent=15 // pred_check
          %p127 = pneg %p48
        $region18: #{tpu_custom_call.1} parent=15 // pred_check_branch
          %129 = sbr.rel (%p127) target = $region20
        $region19: #{tpu_custom_call.1} parent=15 // pred_region
          %p130 = scmp.lt.s32.totalorder %s21, 1
          %s131 = scalar_select %p130, %s21, 1
          %p132 = scmp.lt.s32.totalorder %s22, 0
          %s133 = scalar_select %p132, %s22, 0
          %s134 = sadd.s32 %s133, %s131
          %s135 = smul.addr %s134, 8
          %s136 = scalar_lea.vmem %s0, %s135
        $region20: #{tpu_custom_call.1} parent=15 // pred_fallthru
          _
        // Predicated region
        $region21: #{tpu_custom_call.1} parent=15 // pred_check
          %p137 = pneg %p74
        $region22: #{tpu_custom_call.1} parent=15 // pred_check_branch
          %139 = sbr.rel (%p137) target = $region24
        $region23: #{tpu_custom_call.1} parent=15 // pred_region
          %s140 = sand.u32 %s64, 1
          %s141 = scalar_lea.sflag [#allocation3], %s140
          %s142 = sand.u32 %s64, 1
          %s143 = smul.addr %s142, 16
          %s144 = scalar_lea.vmem [#allocation2], %s143
          %146 = vsyncadd %s141, 0
          %s147 = smul.addr %s21, 2
          %s148 = smul.addr %s147, 8
          %s149 = scalar_lea.hbm %s1, %s148
          %s150 = sshll.u32 %s149, 4
          %s151 = int_to_ptr.hbm [resolvable:$true] %s150
          %s152 = sshll.u32 %s144, 4
          %s153 = int_to_ptr.vmem [resolvable:$true] %s152
          %158 = dma.hbm_to_vmem [thread:$0]  %s151, 256, %s153, %s141, 128, 128, 8
        $region24: #{tpu_custom_call.1} parent=15 // pred_fallthru
          _
      $region16: #{tpu_custom_call.1} parent=5 // pred_fallthru
        _
      %p159 = scmp.le.s32.totalorder 1, %s14
      %p160 = scmp.lt.s32.totalorder %s14, 3
      %p161 = pnand %p159, %p160
      %p162 = pneg %p161
      // Predicated region
      $region25: #{tpu_custom_call.1} parent=5 // pred_check
        _
      $region26: #{tpu_custom_call.1} parent=5 // pred_check_branch
        %164 = sbr.rel (%p161) target = $region28
      $region27: #{tpu_custom_call.1} parent=5 // pred_region
        %s165 = ssub.s32 %s14, 1
        %s166 = sand.u32 %s67, 1
        %s167 = scalar_lea.sflag [#allocation3], %s166
        %s168 = sand.u32 %s67, 1
        %s169 = smul.addr %s168, 16
        %s170 = scalar_lea.vmem [#allocation2], %s169
        // Predicated region
        $region29: #{tpu_custom_call.1} parent=27 // pred_check
          %p171 = pneg %p80
        $region30: #{tpu_custom_call.1} parent=27 // pred_check_branch
          %173 = sbr.rel (%p171) target = $region32
        $region31: #{tpu_custom_call.1} parent=27 // pred_region
          %175 = dma.done %s167, 256
        $region32: #{tpu_custom_call.1} parent=27 // pred_fallthru
          _
        %p176 = scmp.lt.s32.totalorder %s23, 1
        %s177 = scalar_select %p176, %s23, 1
        %p178 = scmp.lt.s32.totalorder %s24, 0
        %s179 = scalar_select %p178, %s24, 0
        %s180 = sadd.s32 %s179, %s177
        %s181 = smul.addr %s180, 8
        %s182 = scalar_lea.vmem %s0, %s181
        %p183 = pneg %p54
        %p184 = pneg %p51
        %s185 = sand.u32 %s67, 1
        %s186 = scalar_lea.sflag [#allocation3], %s185
        %s187 = sand.u32 %s67, 1
        %s188 = smul.addr %s187, 16
        %s189 = scalar_lea.vmem [#allocation2], %s188
        %p190 = pneg %p80
        %p191 = pneg %p77
        %p192 = pneg %p108
        %p193 = pneg %p105
        %s194 = sand.u32 %s95, 1
        %s195 = scalar_lea.sflag [#allocation4], %s194
        %s196 = sand.u32 %s95, 1
        %s197 = smul.addr %s196, 8
        %s198 = scalar_lea.vmem [#allocation5], %s197
        %p199 = scmp.lt.s32.totalorder %s23, 1
        %s200 = scalar_select %p199, %s23, 1
        %p201 = scmp.lt.s32.totalorder %s24, 0
        %s202 = scalar_select %p201, %s24, 0
        %s203 = sadd.s32 %s202, %s200
        %s204 = smul.addr %s203, 8
        %s205 = scalar_lea.vmem %s0, %s204
        %v206 = vld [vmem:[%s170] sm:$0xff]
        %v207 = vld [vmem:[%s170 + $0x8] sm:$0xff]
        %v208 = vld [vmem:[%s205] sm:$0xff]
        %v209 = vlaneseq
        %v210 = vand.u32 %v209, 127
        %211 = vset.pattern.permute.xlu0 0
        %212 = vperm.xlu0 %211, %v208
        %v213 = vpop.permute.xlu0 %212
        %vm214 = vcmp.eq.s32.totalorder %v210, %v213
        %v215 = vsel %vm214, 1, 0
        %v216 = vcvt.s32.f32 %v215
        %217 = vset.pattern.permute.xlu0 1
        %218 = vperm.xlu0 %217, %v208
        %v219 = vpop.permute.xlu0 %218
        %vm220 = vcmp.eq.s32.totalorder %v210, %v219
        %v221 = vsel %vm220, 1, 0
        %v222 = vcvt.s32.f32 %v221
        %vm223 = vcmask 130048
        %v225 = vsel %vm223, %v216, 0
        %227 = vmatpush.msra.mxu0 0.0
        %228 = vmatpush.msra.mxu0 0.0
        %229 = vmatpush.msra.mxu0 0.0
        %230 = vmatpush.msra.mxu0 0.0
        %231 = vmatpush.msra.mxu0 0.0
        %232 = vmatpush.msra.mxu0 0.0
        %233 = vmatpush.msra.mxu0 0.0
        %234 = vmatpush.msra.mxu0 0.0
        %235 = vmatpush.msra.mxu0 0.0
        %236 = vmatpush.msra.mxu0 0.0
        %237 = vmatpush.msra.mxu0 0.0
        %238 = vmatpush.msra.mxu0 0.0
        %239 = vmatpush.msra.mxu0 0.0
        %240 = vmatpush.msra.mxu0 0.0
        %241 = vmatpush.msra.mxu0 %v207
        %242 = vmatpush.msra.mxu0 %v206
        %243 = vmatmul.f32.gmra.mxu0 %v225
        %v244 = vpop.f32.mrf.mxu0
        %v245 = vadd.f32 0.0, %v244
        %246 = vdwg.mxu0
        %v248 = vsel %vm223, %v222, 0
        %250 = vmatpush.msra.mxu0 0.0
        %251 = vmatpush.msra.mxu0 0.0
        %252 = vmatpush.msra.mxu0 0.0
        %253 = vmatpush.msra.mxu0 0.0
        %254 = vmatpush.msra.mxu0 0.0
        %255 = vmatpush.msra.mxu0 0.0
        %256 = vmatpush.msra.mxu0 0.0
        %257 = vmatpush.msra.mxu0 0.0
        %258 = vmatpush.msra.mxu0 0.0
        %259 = vmatpush.msra.mxu0 0.0
        %260 = vmatpush.msra.mxu0 0.0
        %261 = vmatpush.msra.mxu0 0.0
        %262 = vmatpush.msra.mxu0 0.0
        %263 = vmatpush.msra.mxu0 0.0
        %264 = vmatpush.msra.mxu0 %v207
        %265 = vmatpush.msra.mxu0 %v206
        %266 = vmatmul.f32.gmra.mxu0 %v248
        %v267 = vpop.f32.mrf.mxu0
        %v268 = vadd.f32 0.0, %v267
        %269 = vdwg.mxu0
        %vm270 = vcmp.lt.s32.totalorder %v210, 16
        %v271 = vsel %vm270, 1, 0
        %vm272 = vcmp.eq.s32.totalorder %v271, 1
        %v273 = vsel %vm272, %v245, %v268
        %vm274 = vcmask 261120
        %275 = vst.msk [vmem:[%s198] sm:$0xff] %vm274, %v273
        %s276 = sand.u32 %s95, 1
        %s277 = scalar_lea.sflag [#allocation4], %s276
        %s278 = sand.u32 %s95, 1
        %s279 = smul.addr %s278, 8
        %s280 = scalar_lea.vmem [#allocation5], %s279
        // Predicated region
        $region33: #{tpu_custom_call.1} parent=27 // pred_check
          %p281 = pneg %p105
        $region34: #{tpu_custom_call.1} parent=27 // pred_check_branch
          %283 = sbr.rel (%p281) target = $region36
        $region35: #{tpu_custom_call.1} parent=27 // pred_region
          %285 = vsyncadd %s277, 0
          %s286 = sadd.s32 %s24, %s23
          %s287 = smul.addr %s286, 8
          %s288 = scalar_lea.hbm %s2, %s287
          %s290 = sshll.u32 %s280, 4
          %s291 = int_to_ptr.vmem [resolvable:$true] %s290
          %s292 = sshll.u32 %s288, 4
          %s293 = int_to_ptr.hbm [resolvable:$true] %s292
          %295 = dma.vmem_to_hbm [thread:$0]  %s291, 128, %s293, %s277
        $region36: #{tpu_custom_call.1} parent=27 // pred_fallthru
          _
      $region28: #{tpu_custom_call.1} parent=5 // pred_fallthru
        _
      %p296 = scmp.le.s32.totalorder 2, %s14
      // Predicated region
      $region37: #{tpu_custom_call.1} parent=5 // pred_check
        %p297 = pneg %p296
      $region38: #{tpu_custom_call.1} parent=5 // pred_check_branch
        %299 = sbr.rel (%p297) target = $region40
      $region39: #{tpu_custom_call.1} parent=5 // pred_region
        %s300 = ssub.s32 %s14, 2
        // Predicated region
        $region41: #{tpu_custom_call.1} parent=39 // pred_check
          %p301 = pneg %p111
        $region42: #{tpu_custom_call.1} parent=39 // pred_check_branch
          %303 = sbr.rel (%p301) target = $region44
        $region43: #{tpu_custom_call.1} parent=39 // pred_region
          %s304 = sand.u32 %s96, 1
          %s305 = scalar_lea.sflag [#allocation4], %s304
          %s306 = sand.u32 %s96, 1
          %s307 = smul.addr %s306, 8
          %s308 = scalar_lea.vmem [#allocation5], %s307
          %310 = dma.done %s305, 128
        $region44: #{tpu_custom_call.1} parent=39 // pred_fallthru
          _
      $region40: #{tpu_custom_call.1} parent=5 // pred_fallthru
        _
    $region6: #{tpu_custom_call.1} parent=1 // loop_footer
      %s18 = sadd.s32 1, %s14
    $region7: #{tpu_custom_call.1} parent=1 // loop_footer_branch
      %13 = sbr.rel target = $region3
    $region8: #{tpu_custom_call.1} parent=1 // loop_exit
      _
    %311 = vsyncpa [#allocation3], 1
    %s312 = scalar_lea.sflag [#allocation3], 1
    %313 = vsyncpa %s312, 1
    %314 = vsyncpa [#allocation4], 1
    %s315 = scalar_lea.sflag [#allocation4], 1
    %316 = vsyncpa %s315, 1

</llo_original>
